<compile_context>
chip_gen: v5e
topology: v5e:2x2
jax: 0.10.0
libtpu: 0.0.40
codegen_flags: <defaults>
</compile_context>

<pallas_src>
import math

import jax
import jax.numpy as jnp
from jax.experimental import pallas as pl
from jax.experimental.pallas import tpu as pltpu


LN_EPS = 1e-3                    # spec uses eps=0.001 in both LayerNorms
LANE = 128                       # TPU lane width: pad channel dims to a multiple of this
_VMEM_LIMIT = 32 * 1024 * 1024   # explicit scoped-VMEM limit (v7x-safe, headroom on v5e/v6e)
_VMEM_BUDGET = 24 * 1024 * 1024  # TM sizing budget (leaves headroom under the limit)


def _round_up(x, m):
    return ((x + m - 1) // m) * m


def _pick_tm(m, per_row_bytes, fixed_bytes, budget=_VMEM_BUDGET):
    """Largest row tile (multiple of 16, <=512) whose double-buffered footprint fits VMEM."""
    tm = max(16, (budget - fixed_bytes) // max(per_row_bytes, 1))
    tm = min(tm, 512, _round_up(m, 16))   # 512 rows ~ the measured 85%-of-roofline point
    return max(16, (tm // 16) * 16)


# ----------------------------------------------------------------------------
# In-kernel LayerNorm (single-pass stats over the TRUE channel count) + SiLU.
# y's padded lanes are exactly zero (zero-padded weight columns), gamma/beta are
# zero-padded, so padded lanes come out as SiLU(0) == 0 and do not affect stats.
# ----------------------------------------------------------------------------
def _ln_silu(y, g, b, n_true):
    inv_n = 1.0 / float(n_true)
    mean = jnp.sum(y, axis=-1, keepdims=True) * inv_n
    ex2 = jnp.sum(y * y, axis=-1, keepdims=True) * inv_n
    var = ex2 - mean * mean
    yn = (y - mean) * jax.lax.rsqrt(var + LN_EPS) * g + b
    return yn * jax.nn.sigmoid(yn)


# ----------------------------------------------------------------------------
# Fused  y = SiLU(LayerNorm(x @ w))  with an M-tiled grid  (one conv stage).
#   x : (M, K)    bf16  (im2col rows)        -- tiled (TM, K) over the grid
#   w : (K, Np)   bf16  (Np lane-padded)     -- resident across the grid
#   g, b : (1, Np) f32  (zero-padded lanes)  -- resident
# ----------------------------------------------------------------------------
def _make_linear_ln_silu_kernel(n_true):
    def kernel(x_ref, w_ref, g_ref, b_ref, o_ref):
        y = jnp.dot(x_ref[...], w_ref[...], preferred_element_type=jnp.float32)  # MXU, f32 acc
        o_ref[...] = _ln_silu(y, g_ref[...], b_ref[...], n_true)
    return kernel


def linear_ln_silu(x, w, g2d, b2d, n_true):
    M, K = x.shape
    Np = w.shape[1]
    per_row = 2 * (K * 2) + 2 * (Np * 4)          # double-buffered bf16 x rows + f32 out rows
    fixed = K * Np * 2 + 2 * Np * 4               # resident weight + gamma/beta
    TM = _pick_tm(M, per_row, fixed)
    Mp = _round_up(M, TM)
    if Mp != M:
        x = jnp.pad(x, ((0, Mp - M), (0, 0)))
    out = pl.pallas_call(
        _make_linear_ln_silu_kernel(n_true),
        out_shape=jax.ShapeDtypeStruct((Mp, Np), jnp.float32),
        grid_spec=pltpu.PrefetchScalarGridSpec(
            num_scalar_prefetch=0,
            grid=(Mp // TM,),
            in_specs=[
                pl.BlockSpec((TM, K), lambda i: (i, 0)),
                pl.BlockSpec((K, Np), lambda i: (0, 0)),   # weight resident (DMA'd once)
                pl.BlockSpec((1, Np), lambda i: (0, 0)),
                pl.BlockSpec((1, Np), lambda i: (0, 0)),
            ],
            out_specs=pl.BlockSpec((TM, Np), lambda i: (i, 0)),
        ),
        compiler_params=pltpu.CompilerParams(
            dimension_semantics=("parallel",),
            vmem_limit_bytes=_VMEM_LIMIT,
        ),
    )(x, w, g2d, b2d)
    return out[:M] if Mp != M else out


# ----------------------------------------------------------------------------
# Fused MLP trunk: all (Linear no-bias -> LN -> SiLU) layers in ONE pallas_call.
# Intermediate activations never leave VMEM; all weights stay resident.
# ----------------------------------------------------------------------------
def _make_mlp_kernel(n_trues):
    def kernel(*refs):
        x_ref, o_ref = refs[0], refs[-1]
        h = x_ref[...]                                       # bf16 input tile
        for l, n_t in enumerate(n_trues):
            w = refs[1 + 3 * l][...]
            g = refs[2 + 3 * l][...]
            b = refs[3 + 3 * l][...]
            y = jnp.dot(h.astype(w.dtype), w, preferred_element_type=jnp.float32)
            h = _ln_silu(y, g, b, n_t)                       # f32 element-wise math
        o_ref[...] = h
    return kernel


def mlp_forward(x, mlp_params, n_trues):
    """mlp_params: list of (w_bf16 (Kl, Nl), gamma (1, Nl), beta (1, Nl)) lane-padded."""
    M, K = x.shape
    Np = mlp_params[-1][0].shape[1]
    w_bytes = sum(wp.size * 2 + gp.size * 4 + bp.size * 4 for (wp, gp, bp) in mlp_params)
    per_row = 2 * (K * 2) + 2 * (Np * 4) + 4 * Np            # in/out + one f32 intermediate
    TM = _pick_tm(M, per_row, w_bytes)
    Mp = _round_up(M, TM)
    x = x.astype(jnp.bfloat16)
    if Mp != M:
        x = jnp.pad(x, ((0, Mp - M), (0, 0)))
    in_specs = [pl.BlockSpec((TM, K), lambda i: (i, 0))]
    flat_args = [x]
    for (wp, gp, bp) in mlp_params:
        kl, nl = wp.shape
        in_specs += [
            pl.BlockSpec((kl, nl), lambda i: (0, 0)),        # resident weight
            pl.BlockSpec((1, nl), lambda i: (0, 0)),
            pl.BlockSpec((1, nl), lambda i: (0, 0)),
        ]
        flat_args += [wp, gp, bp]
    out = pl.pallas_call(
        _make_mlp_kernel(tuple(n_trues)),
        out_shape=jax.ShapeDtypeStruct((Mp, Np), jnp.float32),
        grid_spec=pltpu.PrefetchScalarGridSpec(
            num_scalar_prefetch=0,
            grid=(Mp // TM,),
            in_specs=in_specs,
            out_specs=pl.BlockSpec((TM, Np), lambda i: (i, 0)),
        ),
        compiler_params=pltpu.CompilerParams(
            dimension_semantics=("parallel",),
            vmem_limit_bytes=_VMEM_LIMIT,
        ),
    )(*flat_args)
    out = out[:M] if Mp != M else out
    return out[:, :n_trues[-1]]          # drop lane padding only at the encoder output


# ----------------------------------------------------------------------------
# Conv2dSamePad glue: "same" padding for stride-2 conv, then im2col (JAX-side).
# ----------------------------------------------------------------------------
def _calc_same_pad(i, k, s, d=1):
    return max((math.ceil(i / s) - 1) * s + (k - 1) * d + 1 - i, 0)


def _im2col(x_pad, k, stride, oh, ow):
    # (B, Hp, Wp, C) -> (B, OH, OW, K*K*C), patch order (kh, kw, ci)
    # TODO(synk): move the stride-2 patch extraction in-kernel (pl.ds strided slices) and
    # fuse all conv stages into one pallas_call with activations held in VMEM scratch;
    # JAX-side im2col still duplicates K*K bytes of activations in HBM.
    patches = []
    for kh in range(k):
        for kw in range(k):
            patches.append(x_pad[:, kh:kh + stride * oh:stride,
                                    kw:kw + stride * ow:stride, :])
    return jnp.concatenate(patches, axis=-1)


def conv_encoder_forward(obs_img, cnn_params, kernel_size=4, stride=2):
    """obs_img: (..., H, W, C) NHWC.  Activations carry the 128-lane channel padding
    between stages; padding is sliced off only at the final flatten."""
    x = obs_img - 0.5                                        # obs -= 0.5
    batch_dims = x.shape[:-3]
    x = x.reshape((-1,) + x.shape[-3:])                      # (B, H, W, C)
    c_true = x.shape[-1]
    for (w2, g2d, b2d, c_out_true) in cnn_params:
        B, H, W, C = x.shape
        ph = _calc_same_pad(H, kernel_size, stride)
        pw = _calc_same_pad(W, kernel_size, stride)
        xp = jnp.pad(x, ((0, 0), (ph // 2, ph - ph // 2), (pw // 2, pw - pw // 2), (0, 0)))
        oh, ow = math.ceil(H / stride), math.ceil(W / stride)
        cols = _im2col(xp, kernel_size, stride, oh, ow)
        cols = cols.reshape(B * oh * ow, kernel_size * kernel_size * C).astype(jnp.bfloat16)
        y = linear_ln_silu(cols, w2, g2d, b2d, c_out_true)   # fused conv + LN + SiLU
        x = y.reshape(B, oh, ow, w2.shape[1])
        c_true = c_out_true
    # PyTorch flattens NCHW: transpose, drop lane padding, reshape.
    B, H, W, Cp = x.shape
    x = jnp.transpose(x, (0, 3, 1, 2))[:, :c_true].reshape(B, c_true * H * W)
    return x.reshape(batch_dims + (x.shape[-1],))


def multi_encoder_forward(obs, cnn_keys, mlp_keys, cnn_params, mlp_params, mlp_n_trues,
                          cnn_outdim, use_camera=True):
    outputs = []
    if cnn_keys:
        if use_camera:
            inputs = jnp.concatenate([obs[k] for k in cnn_keys], -1)
            outputs.append(conv_encoder_forward(inputs, cnn_params))
        else:
            outputs.append(jnp.zeros(obs["is_first"].shape + (cnn_outdim,), jnp.float32))
    if mlp_keys:
        inputs = jnp.concatenate([obs[k] for k in mlp_keys], -1)
        outputs.append(mlp_forward(inputs, mlp_params, mlp_n_trues))
    return jnp.concatenate(outputs, -1)


# ----------------------------------------------------------------------------
# Parameter packing (lane padding with zeros; gamma/beta zero-padded so padded
# lanes produce exactly zero activations).
# ----------------------------------------------------------------------------
def pack_conv_weight(w_t, c_in_pad, c_out_pad):
    # torch conv layout (Cout, Cin, KH, KW) -> (KH*KW*Cin_pad, Cout_pad), (kh, kw, ci) order
    co, ci, kh, kw = w_t.shape
    w = jnp.transpose(w_t, (2, 3, 1, 0))
    w = jnp.pad(w, ((0, 0), (0, 0), (0, c_in_pad - ci), (0, c_out_pad - co)))
    return w.reshape(kh * kw * c_in_pad, c_out_pad).astype(jnp.bfloat16)


def pack_linear_weight(w, k_pad, n_pad):
    k, n = w.shape
    return jnp.pad(w, ((0, k_pad - k), (0, n_pad - n))).astype(jnp.bfloat16)


def pack_ln(gamma, beta, n_pad):
    n = gamma.shape[0]
    g = jnp.pad(gamma, (0, n_pad - n)).reshape(1, n_pad).astype(jnp.float32)
    b = jnp.pad(beta, (0, n_pad - n)).reshape(1, n_pad).astype(jnp.float32)
    return g, b


# ----------------------------------------------------------------------------
# Pure-JAX reference (unpadded math, bf16 matmul inputs to match kernel precision)
# ----------------------------------------------------------------------------
def _ref_linear_ln_silu(x, w, g, b):
    y = jnp.dot(x.astype(jnp.bfloat16), w.astype(jnp.bfloat16),
                preferred_element_type=jnp.float32)
    mean = y.mean(-1, keepdims=True)
    var = ((y - mean) ** 2).mean(-1, keepdims=True)
    yn = (y - mean) * jax.lax.rsqrt(var + LN_EPS) * g + b
    return yn * jax.nn.sigmoid(yn)


if __name__ == "__main__":
    key = jax.random.PRNGKey(0)

    # ---- configuration (MultiEncoder: cnn_keys='image', mlp_keys='vector|proprio',
    #      act='SiLU', norm=True, cnn_depth=8, kernel_size=4, minres=4,
    #      mlp_layers=2, mlp_units=32, symlog_inputs=False, use_camera=True) ----
    B = 2
    H = W = 16
    img_ch = 3
    cnn_depth = 8
    kernel_size = 4
    minres = 4
    mlp_layers = 2
    mlp_units = 32

    cnn_keys = ["image"]                 # cnn_shapes = {'image': (16, 16, 3)}
    mlp_keys = ["vector", "proprio"]     # mlp_shapes = {'vector': (8,), 'proprio': (6,)}
    mlp_in = 8 + 6

    stages = int(math.log2(W) - math.log2(minres))                    # = 2
    cnn_outdim = (cnn_depth * (2 ** stages)) // 2 * minres * minres   # 16 * 4 * 4 = 256

    # ---- deterministic parameter init ----
    keys = jax.random.split(key, 16)
    ki = iter(range(16))

    raw_cnn, cnn_params = [], []
    in_true, out_true = img_ch, cnn_depth
    in_pad = img_ch                               # input image channels are not padded
    for _ in range(stages):
        w_t = 0.05 * jax.random.normal(keys[next(ki)],
                                       (out_true, in_true, kernel_size, kernel_size),
                                       jnp.float32)
        gamma = jnp.ones((out_true,), jnp.float32)
        beta = jnp.zeros((out_true,), jnp.float32)
        raw_cnn.append((w_t, gamma, beta))
        out_pad = _round_up(out_true, LANE)
        w2 = pack_conv_weight(w_t, in_pad, out_pad)
        g2d, b2d = pack_ln(gamma, beta, out_pad)
        cnn_params.append((w2, g2d, b2d, out_true))
        in_true, out_true = out_true, out_true * 2
        in_pad = out_pad

    raw_mlp, mlp_params, n_trues = [], [], []
    d_true, d_pad = mlp_in, mlp_in                # MLP input features are not padded
    for _ in range(mlp_layers):
        w = 0.05 * jax.random.normal(keys[next(ki)], (d_true, mlp_units), jnp.float32)
        gamma = jnp.ones((mlp_units,), jnp.float32)
        beta = jnp.zeros((mlp_units,), jnp.float32)
        raw_mlp.append((w, gamma, beta))
        n_pad = _round_up(mlp_units, LANE)
        mlp_params.append((pack_linear_weight(w, d_pad, n_pad),) + pack_ln(gamma, beta, n_pad))
        n_trues.append(mlp_units)
        d_true, d_pad = mlp_units, n_pad

    # ---- deterministic example observations ----
    obs = {
        "image":   jax.random.uniform(keys[next(ki)], (B, H, W, img_ch), jnp.float32),
        "vector":  jax.random.normal(keys[next(ki)], (B, 8), jnp.float32),
        "proprio": jax.random.normal(keys[next(ki)], (B, 6), jnp.float32),
        "is_first": jnp.zeros((B,), jnp.float32),
    }

    out = multi_encoder_forward(obs, cnn_keys, mlp_keys, cnn_params, mlp_params, n_trues,
                                cnn_outdim, use_camera=True)
    out = jax.block_until_ready(out)
    assert out.shape == (B, cnn_outdim + mlp_units), out.shape

    # ---- sanity check against an unpadded pure-JAX reference of the same math ----
    def ref_forward(obs):
        x = obs["image"] - 0.5
        for (w_t, g, b) in raw_cnn:
            Bx, Hx, Wx, Cx = x.shape
            ph = _calc_same_pad(Hx, kernel_size, 2)
            pw = _calc_same_pad(Wx, kernel_size, 2)
            xp = jnp.pad(x, ((0, 0), (ph // 2, ph - ph // 2), (pw // 2, pw - pw // 2), (0, 0)))
            oh, ow = math.ceil(Hx / 2), math.ceil(Wx / 2)
            cols = _im2col(xp, kernel_size, 2, oh, ow).reshape(Bx * oh * ow, -1)
            w2 = jnp.transpose(w_t, (2, 3, 1, 0)).reshape(kernel_size * kernel_size * Cx, -1)
            x = _ref_linear_ln_silu(cols, w2, g, b).reshape(Bx, oh, ow, -1)
        cnn_out = jnp.transpose(x, (0, 3, 1, 2)).reshape(B, -1)
        m = jnp.concatenate([obs["vector"], obs["proprio"]], -1)
        for (w, g, b) in raw_mlp:
            m = _ref_linear_ln_silu(m, w, g, b)
        return jnp.concatenate([cnn_out, m], -1)

    ref = jax.block_until_ready(ref_forward(obs))
    assert jnp.allclose(out, ref, atol=5e-3, rtol=5e-3), float(jnp.max(jnp.abs(out - ref)))

    print("KERNEL_OK")
</pallas_src>

<mosaic_0001>
module attributes {stable_mosaic.version = 11 : i64} {
  func.func @kernel(%arg0: i32, %arg1: memref<128x48xbf16, #tpu.memory_space<vmem>>, %arg2: memref<48x128xbf16, #tpu.memory_space<vmem>>, %arg3: memref<1x128xf32, #tpu.memory_space<vmem>>, %arg4: memref<1x128xf32, #tpu.memory_space<vmem>>, %arg5: memref<128x128xf32, #tpu.memory_space<vmem>>) attributes {dimension_semantics = [#tpu.dimension_semantics<parallel>], iteration_bounds = array<i64: 1>, scalar_prefetch = 0 : i64, scratch_operands = 0 : i64, tpu.core_type = #tpu.core_type<tc>, window_params = [{transform_indices = @transform_0, window_bounds = array<i64: 128, 48>}, {pipeline_mode = #tpu.pipeline_mode<synchronous>, transform_indices = @transform_1, window_bounds = array<i64: 48, 128>}, {pipeline_mode = #tpu.pipeline_mode<synchronous>, transform_indices = @transform_2, window_bounds = array<i64: 1, 128>}, {pipeline_mode = #tpu.pipeline_mode<synchronous>, transform_indices = @transform_3, window_bounds = array<i64: 1, 128>}, {transform_indices = @transform_4, window_bounds = array<i64: 128, 128>}]} {
    %c0 = arith.constant 0 : index
    %c0_0 = arith.constant 0 : index
    %0 = vector.load %arg1[%c0, %c0_0] : memref<128x48xbf16, #tpu.memory_space<vmem>>, vector<128x48xbf16>
    %c0_1 = arith.constant 0 : index
    %c0_2 = arith.constant 0 : index
    %1 = vector.load %arg2[%c0_1, %c0_2] : memref<48x128xbf16, #tpu.memory_space<vmem>>, vector<48x128xbf16>
    %cst = arith.constant dense<0.000000e+00> : vector<128x128xf32>
    %2 = tpu.matmul %0, %1, %cst {dimension_numbers = #tpu.dot_dimension_numbers<[1], [0], [0], [1], [0, 0, 1, 1], [], []>} : vector<128x48xbf16>, vector<48x128xbf16>, vector<128x128xf32> -> vector<128x128xf32>
    %c0_3 = arith.constant 0 : index
    %c0_4 = arith.constant 0 : index
    %3 = vector.load %arg3[%c0_3, %c0_4] : memref<1x128xf32, #tpu.memory_space<vmem>>, vector<1x128xf32>
    %c0_5 = arith.constant 0 : index
    %c0_6 = arith.constant 0 : index
    %4 = vector.load %arg4[%c0_5, %c0_6] : memref<1x128xf32, #tpu.memory_space<vmem>>, vector<1x128xf32>
    %cst_7 = arith.constant dense<0.000000e+00> : vector<128xf32>
    %5 = vector.multi_reduction <add>, %2, %cst_7 [1] : vector<128x128xf32> to vector<128xf32>
    %6 = vector.shape_cast %5 : vector<128xf32> to vector<128x1xf32>
    %cst_8 = arith.constant 1.250000e-01 : f32
    %7 = vector.broadcast %cst_8 : f32 to vector<128x1xf32>
    %8 = arith.mulf %6, %7 : vector<128x1xf32>
    %9 = arith.mulf %2, %2 : vector<128x128xf32>
    %cst_9 = arith.constant dense<0.000000e+00> : vector<128xf32>
    %10 = vector.multi_reduction <add>, %9, %cst_9 [1] : vector<128x128xf32> to vector<128xf32>
    %11 = vector.shape_cast %10 : vector<128xf32> to vector<128x1xf32>
    %cst_10 = arith.constant 1.250000e-01 : f32
    %12 = vector.broadcast %cst_10 : f32 to vector<128x1xf32>
    %13 = arith.mulf %11, %12 : vector<128x1xf32>
    %14 = arith.mulf %8, %8 : vector<128x1xf32>
    %15 = arith.subf %13, %14 : vector<128x1xf32>
    %16 = vector.broadcast %8 : vector<128x1xf32> to vector<128x128xf32>
    %17 = arith.subf %2, %16 : vector<128x128xf32>
    %cst_11 = arith.constant 1.000000e-03 : f32
    %18 = vector.broadcast %cst_11 : f32 to vector<128x1xf32>
    %19 = arith.addf %15, %18 : vector<128x1xf32>
    %20 = math.rsqrt %19 : vector<128x1xf32>
    %21 = vector.broadcast %20 : vector<128x1xf32> to vector<128x128xf32>
    %22 = arith.mulf %17, %21 : vector<128x128xf32>
    %23 = vector.broadcast %3 : vector<1x128xf32> to vector<128x128xf32>
    %24 = arith.mulf %22, %23 : vector<128x128xf32>
    %25 = vector.broadcast %4 : vector<1x128xf32> to vector<128x128xf32>
    %26 = arith.addf %24, %25 : vector<128x128xf32>
    %27 = arith.negf %26 : vector<128x128xf32>
    %28 = math.exp %27 : vector<128x128xf32>
    %cst_12 = arith.constant 1.000000e+00 : f32
    %29 = vector.broadcast %cst_12 : f32 to vector<128x128xf32>
    %30 = arith.addf %29, %28 : vector<128x128xf32>
    %31 = arith.divf %29, %30 : vector<128x128xf32>
    %32 = arith.mulf %26, %31 : vector<128x128xf32>
    %c0_13 = arith.constant 0 : index
    %c0_14 = arith.constant 0 : index
    %33 = vector.load %arg5[%c0_13, %c0_14] : memref<128x128xf32, #tpu.memory_space<vmem>>, vector<128x128xf32>
    tpu.vector_store %arg5[%c0_13, %c0_14], %32 {strides = array<i32>} : memref<128x128xf32, #tpu.memory_space<vmem>>, vector<128x128xf32>,
    return
  }
  func.func @transform_0(%arg0: i32) -> (i32, i32) {
    %c0_i32 = arith.constant 0 : i32
    %c0_i32_0 = arith.constant 0 : i32
    return %arg0, %c0_i32 : i32, i32
  }
  func.func @transform_1(%arg0: i32) -> (i32, i32) {
    %c0_i32 = arith.constant 0 : i32
    %c0_i32_0 = arith.constant 0 : i32
    %c0_i32_1 = arith.constant 0 : i32
    return %c0_i32, %c0_i32_0 : i32, i32
  }
  func.func @transform_2(%arg0: i32) -> (i32, i32) {
    %c0_i32 = arith.constant 0 : i32
    %c0_i32_0 = arith.constant 0 : i32
    %c0_i32_1 = arith.constant 0 : i32
    return %c0_i32, %c0_i32_0 : i32, i32
  }
  func.func @transform_3(%arg0: i32) -> (i32, i32) {
    %c0_i32 = arith.constant 0 : i32
    %c0_i32_0 = arith.constant 0 : i32
    %c0_i32_1 = arith.constant 0 : i32
    return %c0_i32, %c0_i32_0 : i32, i32
  }
  func.func @transform_4(%arg0: i32) -> (i32, i32) {
    %c0_i32 = arith.constant 0 : i32
    %c0_i32_0 = arith.constant 0 : i32
    return %arg0, %c0_i32 : i32, i32
  }
}

</mosaic_0001>

<llo_original>
// kernel: tpu_custom_call.1
$region0: #{tpu_custom_call.1}
  #allocation0 [shape = 'u32[]', space=smem, size = 0x4, offset = 0x4, fixed_abs, tag = 'smem constant byte address 0x4 - core index']
  #allocation1 [shape = 'u32[72,128]{1,0:T(1,128)}', space=vmem, size = 0x9000, scoped, tag = 'internal scratch']
  %s0 = inlined_call_operand.vmem [shape: bf16[128,48], index: 0, kind: input, shape index: {}]
  %s1 = inlined_call_operand.vmem [shape: bf16[48,128], index: 1, kind: input, shape index: {}]
  %s2 = inlined_call_operand.vmem [shape: f32[1,128], index: 2, kind: input, shape index: {}]
  %s3 = inlined_call_operand.vmem [shape: f32[1,128], index: 3, kind: input, shape index: {}]
  %s4 = inlined_call_operand.hbm [shape: f32[128,128], index: 4, kind: output, shape index: {}]
  %s5 = sld [smem:[#allocation0]]
  $region26: #{tpu_custom_call.1} parent=0
    _
  %s7 = ssub.s32 1, %s5
  %s8 = scalar_select 0, %s7, %s5
  $region1: #{tpu_custom_call.1} parent=0
    #allocation2 [shape = 'u8[65536]{0}', space=vmem, size = 0x10000, scoped, tag = 'output window, operand 0, single buffered']
    #allocation3 [shape = 's32[1]{0}', space=sflag, size = 0x4, scoped, tag = 'scoped memory for tpu_custom_call.1']
    %9 = vsyncpa [#allocation3], 0
    // Predicated region
    $region2: #{tpu_custom_call.1} parent=1 // pred_check
      _
    $region3: #{tpu_custom_call.1} parent=1 // pred_check_branch
      %11 = sbr.rel (0) target = $region5
    $region4: #{tpu_custom_call.1} parent=1 // pred_region
      _
    $region5: #{tpu_custom_call.1} parent=1 // pred_fallthru
      _
    // Predicated region
    $region6: #{tpu_custom_call.1} parent=1 // pred_check
      _
    $region7: #{tpu_custom_call.1} parent=1 // pred_check_branch
      %13 = sbr.rel (0) target = $region9
    $region8: #{tpu_custom_call.1} parent=1 // pred_region
      _
    $region9: #{tpu_custom_call.1} parent=1 // pred_fallthru
      _
    // Predicated region
    $region10: #{tpu_custom_call.1} parent=1 // pred_check
      _
    $region11: #{tpu_custom_call.1} parent=1 // pred_check_branch
      %15 = sbr.rel (0) target = $region13
    $region12: #{tpu_custom_call.1} parent=1 // pred_region
      _
    $region13: #{tpu_custom_call.1} parent=1 // pred_fallthru
      _
    // Predicated region
    $region14: #{tpu_custom_call.1} parent=1 // pred_check
      _
    $region15: #{tpu_custom_call.1} parent=1 // pred_check_branch
      %17 = sbr.rel (0) target = $region17
    $region16: #{tpu_custom_call.1} parent=1 // pred_region
      _
    $region17: #{tpu_custom_call.1} parent=1 // pred_fallthru
      _
    %v19 = vld [vmem:[%s0] sm:$0xf]
    %v20 = vld [vmem:[%s0 + $0x4] sm:$0xf]
    %v21 = vld [vmem:[%s0 + $0x8] sm:$0xf]
    %v22 = vld [vmem:[%s0 + $0xc] sm:$0xf]
    %v23 = vld [vmem:[%s0 + $0x10] sm:$0xf]
    %v24 = vld [vmem:[%s0 + $0x14] sm:$0xf]
    %v25 = vld [vmem:[%s0 + $0x18] sm:$0xf]
    %v26 = vld [vmem:[%s0 + $0x1c] sm:$0xf]
    %v27 = vld [vmem:[%s0 + $0x20] sm:$0xf]
    %v28 = vld [vmem:[%s0 + $0x24] sm:$0xf]
    %v29 = vld [vmem:[%s0 + $0x28] sm:$0xf]
    %v30 = vld [vmem:[%s0 + $0x2c] sm:$0xf]
    %v31 = vld [vmem:[%s0 + $0x30] sm:$0xf]
    %v32 = vld [vmem:[%s0 + $0x34] sm:$0xf]
    %v33 = vld [vmem:[%s0 + $0x38] sm:$0xf]
    %v34 = vld [vmem:[%s0 + $0x3c] sm:$0xf]
    %v35 = vld [vmem:[%s1] sm:$0xf]
    %v36 = vld [vmem:[%s1 + $0x4] sm:$0xf]
    %v37 = vld [vmem:[%s1 + $0x8] sm:$0xf]
    %v38 = vld [vmem:[%s1 + $0xc] sm:$0xf]
    %v39 = vld [vmem:[%s1 + $0x10] sm:$0xf]
    %v40 = vld [vmem:[%s1 + $0x14] sm:$0xf]
    %v57 = vunpack.c.l.b16 %v19
    %v58 = vunpack.c.l.b16 %v20
    %v59 = vunpack.c.l.b16 %v21
    %v60 = vunpack.c.l.b16 %v22
    %v61 = vunpack.c.l.b16 %v23
    %v62 = vunpack.c.l.b16 %v24
    %v63 = vunpack.c.l.b16 %v25
    %v64 = vunpack.c.l.b16 %v26
    %v65 = vunpack.c.l.b16 %v27
    %v66 = vunpack.c.l.b16 %v28
    %v67 = vunpack.c.l.b16 %v29
    %v68 = vunpack.c.l.b16 %v30
    %v69 = vunpack.c.l.b16 %v31
    %v70 = vunpack.c.l.b16 %v32
    %v71 = vunpack.c.l.b16 %v33
    %v72 = vunpack.c.l.b16 %v34
    %v73 = vpack.c.b16 %v58, %v57
    %v74 = vpack.c.b16 %v60, %v59
    %v75 = vpack.c.b16 %v62, %v61
    %v76 = vpack.c.b16 %v64, %v63
    %v77 = vpack.c.b16 %v66, %v65
    %v78 = vpack.c.b16 %v68, %v67
    %v79 = vpack.c.b16 %v70, %v69
    %v80 = vpack.c.b16 %v72, %v71
    %v87 = vunpack.c.l.b16 %v35
    %v88 = vunpack.c.l.b16 %v36
    %v89 = vunpack.c.l.b16 %v37
    %v90 = vunpack.c.l.b16 %v38
    %v91 = vunpack.c.l.b16 %v39
    %v92 = vunpack.c.l.b16 %v40
    %v93 = vpack.c.b16 %v88, %v87
    %v94 = vpack.c.b16 %v90, %v89
    %v95 = vpack.c.b16 %v92, %v91
    %vm99 = vcmask 392192
    %v101 = vsel %vm99, %v73, 0
    %v104 = vsel %vm99, %v74, 0
    %v107 = vsel %vm99, %v75, 0
    %v110 = vsel %vm99, %v76, 0
    %v113 = vsel %vm99, %v77, 0
    %v116 = vsel %vm99, %v78, 0
    %v119 = vsel %vm99, %v79, 0
    %v122 = vsel %vm99, %v80, 0
    %124 = vmatpush.bf16.msra.mxu0 0
    %125 = vmatpush.bf16.msra.mxu0 0
    %126 = vmatpush.bf16.msra.mxu0 0
    %127 = vmatpush.bf16.msra.mxu0 0
    %128 = vmatpush.bf16.msra.mxu0 0
    %129 = vmatpush.bf16.msra.mxu0 %v95
    %130 = vmatpush.bf16.msra.mxu0 %v94
    %131 = vmatpush.bf16.msra.mxu0 %v93
    %132 = vmatmul.bf16.gmra.mxu0 %v101
    %v133 = vpop.f32.mrf.mxu0
    %v134 = vadd.f32 0.0, %v133
    %v135 = vpop.f32.mrf.mxu0
    %v136 = vadd.f32 0.0, %v135
    %137 = vmatmul.bf16.gmra.mxu0 %v104
    %v138 = vpop.f32.mrf.mxu0
    %v139 = vadd.f32 0.0, %v138
    %v140 = vpop.f32.mrf.mxu0
    %v141 = vadd.f32 0.0, %v140
    %142 = vmatmul.bf16.gmra.mxu0 %v107
    %v143 = vpop.f32.mrf.mxu0
    %v144 = vadd.f32 0.0, %v143
    %v145 = vpop.f32.mrf.mxu0
    %v146 = vadd.f32 0.0, %v145
    %147 = vmatmul.bf16.gmra.mxu0 %v110
    %v148 = vpop.f32.mrf.mxu0
    %v149 = vadd.f32 0.0, %v148
    %v150 = vpop.f32.mrf.mxu0
    %v151 = vadd.f32 0.0, %v150
    %152 = vmatmul.bf16.gmra.mxu0 %v113
    %v153 = vpop.f32.mrf.mxu0
    %v154 = vadd.f32 0.0, %v153
    %v155 = vpop.f32.mrf.mxu0
    %v156 = vadd.f32 0.0, %v155
    %157 = vmatmul.bf16.gmra.mxu0 %v116
    %v158 = vpop.f32.mrf.mxu0
    %v159 = vadd.f32 0.0, %v158
    %v160 = vpop.f32.mrf.mxu0
    %v161 = vadd.f32 0.0, %v160
    %162 = vmatmul.bf16.gmra.mxu0 %v119
    %v163 = vpop.f32.mrf.mxu0
    %v164 = vadd.f32 0.0, %v163
    %v165 = vpop.f32.mrf.mxu0
    %v166 = vadd.f32 0.0, %v165
    %167 = vmatmul.bf16.gmra.mxu0 %v122
    %v168 = vpop.f32.mrf.mxu0
    %v169 = vadd.f32 0.0, %v168
    %v170 = vpop.f32.mrf.mxu0
    %v171 = vadd.f32 0.0, %v170
    %172 = vdwg.mxu0
    %v173 = vld [vmem:[%s2] sm:$0x1]
    %v174 = vld [vmem:[%s3] sm:$0x1]
    %175 = vadd.xlane.f32.xlu0 %v134
    %v176 = vpop.xlane.xlu0 %175
    %177 = vadd.xlane.f32.xlu0 %v136
    %v178 = vpop.xlane.xlu0 %177
    %179 = vadd.xlane.f32.xlu0 %v139
    %v180 = vpop.xlane.xlu0 %179
    %181 = vadd.xlane.f32.xlu0 %v141
    %v182 = vpop.xlane.xlu0 %181
    %183 = vadd.xlane.f32.xlu0 %v144
    %v184 = vpop.xlane.xlu0 %183
    %185 = vadd.xlane.f32.xlu0 %v146
    %v186 = vpop.xlane.xlu0 %185
    %187 = vadd.xlane.f32.xlu0 %v149
    %v188 = vpop.xlane.xlu0 %187
    %189 = vadd.xlane.f32.xlu0 %v151
    %v190 = vpop.xlane.xlu0 %189
    %191 = vadd.xlane.f32.xlu0 %v154
    %v192 = vpop.xlane.xlu0 %191
    %193 = vadd.xlane.f32.xlu0 %v156
    %v194 = vpop.xlane.xlu0 %193
    %195 = vadd.xlane.f32.xlu0 %v159
    %v196 = vpop.xlane.xlu0 %195
    %197 = vadd.xlane.f32.xlu0 %v161
    %v198 = vpop.xlane.xlu0 %197
    %199 = vadd.xlane.f32.xlu0 %v164
    %v200 = vpop.xlane.xlu0 %199
    %201 = vadd.xlane.f32.xlu0 %v166
    %v202 = vpop.xlane.xlu0 %201
    %203 = vadd.xlane.f32.xlu0 %v169
    %v204 = vpop.xlane.xlu0 %203
    %205 = vadd.xlane.f32.xlu0 %v171
    %v206 = vpop.xlane.xlu0 %205
    %v207 = vmul.f32 %v176, 0.125
    %v208 = vmul.f32 %v178, 0.125
    %v209 = vmul.f32 %v180, 0.125
    %v210 = vmul.f32 %v182, 0.125
    %v211 = vmul.f32 %v184, 0.125
    %v212 = vmul.f32 %v186, 0.125
    %v213 = vmul.f32 %v188, 0.125
    %v214 = vmul.f32 %v190, 0.125
    %v215 = vmul.f32 %v192, 0.125
    %v216 = vmul.f32 %v194, 0.125
    %v217 = vmul.f32 %v196, 0.125
    %v218 = vmul.f32 %v198, 0.125
    %v219 = vmul.f32 %v200, 0.125
    %v220 = vmul.f32 %v202, 0.125
    %v221 = vmul.f32 %v204, 0.125
    %v222 = vmul.f32 %v206, 0.125
    %v223 = vmul.f32 %v134, %v134
    %v224 = vmul.f32 %v136, %v136
    %v225 = vmul.f32 %v139, %v139
    %v226 = vmul.f32 %v141, %v141
    %v227 = vmul.f32 %v144, %v144
    %v228 = vmul.f32 %v146, %v146
    %v229 = vmul.f32 %v149, %v149
    %v230 = vmul.f32 %v151, %v151
    %v231 = vmul.f32 %v154, %v154
    %v232 = vmul.f32 %v156, %v156
    %v233 = vmul.f32 %v159, %v159
    %v234 = vmul.f32 %v161, %v161
    %v235 = vmul.f32 %v164, %v164
    %v236 = vmul.f32 %v166, %v166
    %v237 = vmul.f32 %v169, %v169
    %v238 = vmul.f32 %v171, %v171
    %239 = vadd.xlane.f32.xlu0 %v223
    %v240 = vpop.xlane.xlu0 %239
    %241 = vadd.xlane.f32.xlu0 %v224
    %v242 = vpop.xlane.xlu0 %241
    %243 = vadd.xlane.f32.xlu0 %v225
    %v244 = vpop.xlane.xlu0 %243
    %245 = vadd.xlane.f32.xlu0 %v226
    %v246 = vpop.xlane.xlu0 %245
    %247 = vadd.xlane.f32.xlu0 %v227
    %v248 = vpop.xlane.xlu0 %247
    %249 = vadd.xlane.f32.xlu0 %v228
    %v250 = vpop.xlane.xlu0 %249
    %251 = vadd.xlane.f32.xlu0 %v229
    %v252 = vpop.xlane.xlu0 %251
    %253 = vadd.xlane.f32.xlu0 %v230
    %v254 = vpop.xlane.xlu0 %253
    %255 = vadd.xlane.f32.xlu0 %v231
    %v256 = vpop.xlane.xlu0 %255
    %257 = vadd.xlane.f32.xlu0 %v232
    %v258 = vpop.xlane.xlu0 %257
    %259 = vadd.xlane.f32.xlu0 %v233
    %v260 = vpop.xlane.xlu0 %259
    %261 = vadd.xlane.f32.xlu0 %v234
    %v262 = vpop.xlane.xlu0 %261
    %263 = vadd.xlane.f32.xlu0 %v235
    %v264 = vpop.xlane.xlu0 %263
    %265 = vadd.xlane.f32.xlu0 %v236
    %v266 = vpop.xlane.xlu0 %265
    %267 = vadd.xlane.f32.xlu0 %v237
    %v268 = vpop.xlane.xlu0 %267
    %269 = vadd.xlane.f32.xlu0 %v238
    %v270 = vpop.xlane.xlu0 %269
    %v271 = vmul.f32 %v240, 0.125
    %v272 = vmul.f32 %v242, 0.125
    %v273 = vmul.f32 %v244, 0.125
    %v274 = vmul.f32 %v246, 0.125
    %v275 = vmul.f32 %v248, 0.125
    %v276 = vmul.f32 %v250, 0.125
    %v277 = vmul.f32 %v252, 0.125
    %v278 = vmul.f32 %v254, 0.125
    %v279 = vmul.f32 %v256, 0.125
    %v280 = vmul.f32 %v258, 0.125
    %v281 = vmul.f32 %v260, 0.125
    %v282 = vmul.f32 %v262, 0.125
    %v283 = vmul.f32 %v264, 0.125
    %v284 = vmul.f32 %v266, 0.125
    %v285 = vmul.f32 %v268, 0.125
    %v286 = vmul.f32 %v270, 0.125
    %v287 = vmul.f32 %v207, %v207
    %v288 = vmul.f32 %v208, %v208
    %v289 = vmul.f32 %v209, %v209
    %v290 = vmul.f32 %v210, %v210
    %v291 = vmul.f32 %v211, %v211
    %v292 = vmul.f32 %v212, %v212
    %v293 = vmul.f32 %v213, %v213
    %v294 = vmul.f32 %v214, %v214
    %v295 = vmul.f32 %v215, %v215
    %v296 = vmul.f32 %v216, %v216
    %v297 = vmul.f32 %v217, %v217
    %v298 = vmul.f32 %v218, %v218
    %v299 = vmul.f32 %v219, %v219
    %v300 = vmul.f32 %v220, %v220
    %v301 = vmul.f32 %v221, %v221
    %v302 = vmul.f32 %v222, %v222
    %v303 = vsub.f32 %v271, %v287
    %v304 = vsub.f32 %v272, %v288
    %v305 = vsub.f32 %v273, %v289
    %v306 = vsub.f32 %v274, %v290
    %v307 = vsub.f32 %v275, %v291
    %v308 = vsub.f32 %v276, %v292
    %v309 = vsub.f32 %v277, %v293
    %v310 = vsub.f32 %v278, %v294
    %v311 = vsub.f32 %v279, %v295
    %v312 = vsub.f32 %v280, %v296
    %v313 = vsub.f32 %v281, %v297
    %v314 = vsub.f32 %v282, %v298
    %v315 = vsub.f32 %v283, %v299
    %v316 = vsub.f32 %v284, %v300
    %v317 = vsub.f32 %v285, %v301
    %v318 = vsub.f32 %v286, %v302
    %v319 = vsub.f32 %v134, %v207
    %v320 = vsub.f32 %v136, %v208
    %v321 = vsub.f32 %v139, %v209
    %v322 = vsub.f32 %v141, %v210
    %v323 = vsub.f32 %v144, %v211
    %v324 = vsub.f32 %v146, %v212
    %v325 = vsub.f32 %v149, %v213
    %v326 = vsub.f32 %v151, %v214
    %v327 = vsub.f32 %v154, %v215
    %v328 = vsub.f32 %v156, %v216
    %v329 = vsub.f32 %v159, %v217
    %v330 = vsub.f32 %v161, %v218
    %v331 = vsub.f32 %v164, %v219
    %v332 = vsub.f32 %v166, %v220
    %v333 = vsub.f32 %v169, %v221
    %v334 = vsub.f32 %v171, %v222
    %v335 = vadd.f32 %v303, 0.001
    %v336 = vadd.f32 %v304, 0.001
    %v337 = vadd.f32 %v305, 0.001
    %v338 = vadd.f32 %v306, 0.001
    %v339 = vadd.f32 %v307, 0.001
    %v340 = vadd.f32 %v308, 0.001
    %v341 = vadd.f32 %v309, 0.001
    %v342 = vadd.f32 %v310, 0.001
    %v343 = vadd.f32 %v311, 0.001
    %v344 = vadd.f32 %v312, 0.001
    %v345 = vadd.f32 %v313, 0.001
    %v346 = vadd.f32 %v314, 0.001
    %v347 = vadd.f32 %v315, 0.001
    %v348 = vadd.f32 %v316, 0.001
    %v349 = vadd.f32 %v317, 0.001
    %v350 = vadd.f32 %v318, 0.001
    %v351 = vrsqrt.pop %v335
    %v352 = vmul.f32 %v351, %v335
    %v353 = vmul.f32 %v352, %v351
    %v354 = vmul.f32 0.5, %v353
    %v355 = vsub.f32 1.5, %v354
    %v356 = vmul.f32 %v351, %v355
    %vm357 = vweird.f32 %v335
    %vm358 = vweird.f32 %v351
    %vm359 = vmor %vm357, %vm358
    %v360 = vsel %vm359, %v351, %v356
    %v361 = vrsqrt.pop %v336
    %v362 = vmul.f32 %v361, %v336
    %v363 = vmul.f32 %v362, %v361
    %v364 = vmul.f32 0.5, %v363
    %v365 = vsub.f32 1.5, %v364
    %v366 = vmul.f32 %v361, %v365
    %vm367 = vweird.f32 %v336
    %vm368 = vweird.f32 %v361
    %vm369 = vmor %vm367, %vm368
    %v370 = vsel %vm369, %v361, %v366
    %v371 = vrsqrt.pop %v337
    %v372 = vmul.f32 %v371, %v337
    %v373 = vmul.f32 %v372, %v371
    %v374 = vmul.f32 0.5, %v373
    %v375 = vsub.f32 1.5, %v374
    %v376 = vmul.f32 %v371, %v375
    %vm377 = vweird.f32 %v337
    %vm378 = vweird.f32 %v371
    %vm379 = vmor %vm377, %vm378
    %v380 = vsel %vm379, %v371, %v376
    %v381 = vrsqrt.pop %v338
    %v382 = vmul.f32 %v381, %v338
    %v383 = vmul.f32 %v382, %v381
    %v384 = vmul.f32 0.5, %v383
    %v385 = vsub.f32 1.5, %v384
    %v386 = vmul.f32 %v381, %v385
    %vm387 = vweird.f32 %v338
    %vm388 = vweird.f32 %v381
    %vm389 = vmor %vm387, %vm388
    %v390 = vsel %vm389, %v381, %v386
    %v391 = vrsqrt.pop %v339
    %v392 = vmul.f32 %v391, %v339
    %v393 = vmul.f32 %v392, %v391
    %v394 = vmul.f32 0.5, %v393
    %v395 = vsub.f32 1.5, %v394
    %v396 = vmul.f32 %v391, %v395
    %vm397 = vweird.f32 %v339
    %vm398 = vweird.f32 %v391
    %vm399 = vmor %vm397, %vm398
    %v400 = vsel %vm399, %v391, %v396
    %v401 = vrsqrt.pop %v340
    %v402 = vmul.f32 %v401, %v340
    %v403 = vmul.f32 %v402, %v401
    %v404 = vmul.f32 0.5, %v403
    %v405 = vsub.f32 1.5, %v404
    %v406 = vmul.f32 %v401, %v405
    %vm407 = vweird.f32 %v340
    %vm408 = vweird.f32 %v401
    %vm409 = vmor %vm407, %vm408
    %v410 = vsel %vm409, %v401, %v406
    %v411 = vrsqrt.pop %v341
    %v412 = vmul.f32 %v411, %v341
    %v413 = vmul.f32 %v412, %v411
    %v414 = vmul.f32 0.5, %v413
    %v415 = vsub.f32 1.5, %v414
    %v416 = vmul.f32 %v411, %v415
    %vm417 = vweird.f32 %v341
    %vm418 = vweird.f32 %v411
    %vm419 = vmor %vm417, %vm418
    %v420 = vsel %vm419, %v411, %v416
    %v421 = vrsqrt.pop %v342
    %v422 = vmul.f32 %v421, %v342
    %v423 = vmul.f32 %v422, %v421
    %v424 = vmul.f32 0.5, %v423
    %v425 = vsub.f32 1.5, %v424
    %v426 = vmul.f32 %v421, %v425
    %vm427 = vweird.f32 %v342
    %vm428 = vweird.f32 %v421
    %vm429 = vmor %vm427, %vm428
    %v430 = vsel %vm429, %v421, %v426
    %v431 = vrsqrt.pop %v343
    %v432 = vmul.f32 %v431, %v343
    %v433 = vmul.f32 %v432, %v431
    %v434 = vmul.f32 0.5, %v433
    %v435 = vsub.f32 1.5, %v434
    %v436 = vmul.f32 %v431, %v435
    %vm437 = vweird.f32 %v343
    %vm438 = vweird.f32 %v431
    %vm439 = vmor %vm437, %vm438
    %v440 = vsel %vm439, %v431, %v436
    %v441 = vrsqrt.pop %v344
    %v442 = vmul.f32 %v441, %v344
    %v443 = vmul.f32 %v442, %v441
    %v444 = vmul.f32 0.5, %v443
    %v445 = vsub.f32 1.5, %v444
    %v446 = vmul.f32 %v441, %v445
    %vm447 = vweird.f32 %v344
    %vm448 = vweird.f32 %v441
    %vm449 = vmor %vm447, %vm448
    %v450 = vsel %vm449, %v441, %v446
    %v451 = vrsqrt.pop %v345
    %v452 = vmul.f32 %v451, %v345
    %v453 = vmul.f32 %v452, %v451
    %v454 = vmul.f32 0.5, %v453
    %v455 = vsub.f32 1.5, %v454
    %v456 = vmul.f32 %v451, %v455
    %vm457 = vweird.f32 %v345
    %vm458 = vweird.f32 %v451
    %vm459 = vmor %vm457, %vm458
    %v460 = vsel %vm459, %v451, %v456
    %v461 = vrsqrt.pop %v346
    %v462 = vmul.f32 %v461, %v346
    %v463 = vmul.f32 %v462, %v461
    %v464 = vmul.f32 0.5, %v463
    %v465 = vsub.f32 1.5, %v464
    %v466 = vmul.f32 %v461, %v465
    %vm467 = vweird.f32 %v346
    %vm468 = vweird.f32 %v461
    %vm469 = vmor %vm467, %vm468
    %v470 = vsel %vm469, %v461, %v466
    %v471 = vrsqrt.pop %v347
    %v472 = vmul.f32 %v471, %v347
    %v473 = vmul.f32 %v472, %v471
    %v474 = vmul.f32 0.5, %v473
    %v475 = vsub.f32 1.5, %v474
    %v476 = vmul.f32 %v471, %v475
    %vm477 = vweird.f32 %v347
    %vm478 = vweird.f32 %v471
    %vm479 = vmor %vm477, %vm478
    %v480 = vsel %vm479, %v471, %v476
    %v481 = vrsqrt.pop %v348
    %v482 = vmul.f32 %v481, %v348
    %v483 = vmul.f32 %v482, %v481
    %v484 = vmul.f32 0.5, %v483
    %v485 = vsub.f32 1.5, %v484
    %v486 = vmul.f32 %v481, %v485
    %vm487 = vweird.f32 %v348
    %vm488 = vweird.f32 %v481
    %vm489 = vmor %vm487, %vm488
    %v490 = vsel %vm489, %v481, %v486
    %v491 = vrsqrt.pop %v349
    %v492 = vmul.f32 %v491, %v349
    %v493 = vmul.f32 %v492, %v491
    %v494 = vmul.f32 0.5, %v493
    %v495 = vsub.f32 1.5, %v494
    %v496 = vmul.f32 %v491, %v495
    %vm497 = vweird.f32 %v349
    %vm498 = vweird.f32 %v491
    %vm499 = vmor %vm497, %vm498
    %v500 = vsel %vm499, %v491, %v496
    %v501 = vrsqrt.pop %v350
    %v502 = vmul.f32 %v501, %v350
    %v503 = vmul.f32 %v502, %v501
    %v504 = vmul.f32 0.5, %v503
    %v505 = vsub.f32 1.5, %v504
    %v506 = vmul.f32 %v501, %v505
    %vm507 = vweird.f32 %v350
    %vm508 = vweird.f32 %v501
    %vm509 = vmor %vm507, %vm508
    %v510 = vsel %vm509, %v501, %v506
    %v511 = vmul.f32 %v319, %v360
    %v512 = vmul.f32 %v320, %v370
    %v513 = vmul.f32 %v321, %v380
    %v514 = vmul.f32 %v322, %v390
    %v515 = vmul.f32 %v323, %v400
    %v516 = vmul.f32 %v324, %v410
    %v517 = vmul.f32 %v325, %v420
    %v518 = vmul.f32 %v326, %v430
    %v519 = vmul.f32 %v327, %v440
    %v520 = vmul.f32 %v328, %v450
    %v521 = vmul.f32 %v329, %v460
    %v522 = vmul.f32 %v330, %v470
    %v523 = vmul.f32 %v331, %v480
    %v524 = vmul.f32 %v332, %v490
    %v525 = vmul.f32 %v333, %v500
    %v526 = vmul.f32 %v334, %v510
    %v528 = vperm.slane %v173, 0
    %v530 = vmul.f32 %v511, %v528
    %v531 = vmul.f32 %v512, %v528
    %v532 = vmul.f32 %v513, %v528
    %v533 = vmul.f32 %v514, %v528
    %v534 = vmul.f32 %v515, %v528
    %v535 = vmul.f32 %v516, %v528
    %v536 = vmul.f32 %v517, %v528
    %v537 = vmul.f32 %v518, %v528
    %v538 = vmul.f32 %v519, %v528
    %v539 = vmul.f32 %v520, %v528
    %v540 = vmul.f32 %v521, %v528
    %v541 = vmul.f32 %v522, %v528
    %v542 = vmul.f32 %v523, %v528
    %v543 = vmul.f32 %v524, %v528
    %v544 = vmul.f32 %v525, %v528
    %v545 = vmul.f32 %v526, %v528
    %v547 = vperm.slane %v174, 0
    %v549 = vadd.f32 %v530, %v547
    %v550 = vadd.f32 %v531, %v547
    %v551 = vadd.f32 %v532, %v547
    %v552 = vadd.f32 %v533, %v547
    %v553 = vadd.f32 %v534, %v547
    %v554 = vadd.f32 %v535, %v547
    %v555 = vadd.f32 %v536, %v547
    %v556 = vadd.f32 %v537, %v547
    %v557 = vadd.f32 %v538, %v547
    %v558 = vadd.f32 %v539, %v547
    %v559 = vadd.f32 %v540, %v547
    %v560 = vadd.f32 %v541, %v547
    %v561 = vadd.f32 %v542, %v547
    %v562 = vadd.f32 %v543, %v547
    %v563 = vadd.f32 %v544, %v547
    %v564 = vadd.f32 %v545, %v547
    %v565 = vxor.u32 %v549, 2147483648
    %v566 = vxor.u32 %v550, 2147483648
    %v567 = vxor.u32 %v551, 2147483648
    %v568 = vxor.u32 %v552, 2147483648
    %v569 = vxor.u32 %v553, 2147483648
    %v570 = vxor.u32 %v554, 2147483648
    %v571 = vxor.u32 %v555, 2147483648
    %v572 = vxor.u32 %v556, 2147483648
    %v573 = vxor.u32 %v557, 2147483648
    %v574 = vxor.u32 %v558, 2147483648
    %v575 = vxor.u32 %v559, 2147483648
    %v576 = vxor.u32 %v560, 2147483648
    %v577 = vxor.u32 %v561, 2147483648
    %v578 = vxor.u32 %v562, 2147483648
    %v579 = vxor.u32 %v563, 2147483648
    %v580 = vxor.u32 %v564, 2147483648
    %v581 = vmul.f32 %v565, 1.442695
    %v582 = vpow.pop %v581
    %v583 = vmul.f32 %v566, 1.442695
    %v584 = vpow.pop %v583
    %v585 = vmul.f32 %v567, 1.442695
    %v586 = vpow.pop %v585
    %v587 = vmul.f32 %v568, 1.442695
    %v588 = vpow.pop %v587
    %v589 = vmul.f32 %v569, 1.442695
    %v590 = vpow.pop %v589
    %v591 = vmul.f32 %v570, 1.442695
    %v592 = vpow.pop %v591
    %v593 = vmul.f32 %v571, 1.442695
    %v594 = vpow.pop %v593
    %v595 = vmul.f32 %v572, 1.442695
    %v596 = vpow.pop %v595
    %v597 = vmul.f32 %v573, 1.442695
    %v598 = vpow.pop %v597
    %v599 = vmul.f32 %v574, 1.442695
    %v600 = vpow.pop %v599
    %v601 = vmul.f32 %v575, 1.442695
    %v602 = vpow.pop %v601
    %v603 = vmul.f32 %v576, 1.442695
    %v604 = vpow.pop %v603
    %v605 = vmul.f32 %v577, 1.442695
    %v606 = vpow.pop %v605
    %v607 = vmul.f32 %v578, 1.442695
    %v608 = vpow.pop %v607
    %v609 = vmul.f32 %v579, 1.442695
    %v610 = vpow.pop %v609
    %v611 = vmul.f32 %v580, 1.442695
    %v612 = vpow.pop %v611
    %v613 = vadd.f32 %v582, 1.0
    %v614 = vadd.f32 %v584, 1.0
    %v615 = vadd.f32 %v586, 1.0
    %v616 = vadd.f32 %v588, 1.0
    %v617 = vadd.f32 %v590, 1.0
    %v618 = vadd.f32 %v592, 1.0
    %v619 = vadd.f32 %v594, 1.0
    %v620 = vadd.f32 %v596, 1.0
    %v621 = vadd.f32 %v598, 1.0
    %v622 = vadd.f32 %v600, 1.0
    %v623 = vadd.f32 %v602, 1.0
    %v624 = vadd.f32 %v604, 1.0
    %v625 = vadd.f32 %v606, 1.0
    %v626 = vadd.f32 %v608, 1.0
    %v627 = vadd.f32 %v610, 1.0
    %v628 = vadd.f32 %v612, 1.0
    %v629 = vrcp.pop %v613
    %v630 = vmul.f32 %v613, %v629
    %v631 = vsub.f32 1.0, %v630
    %v632 = vmul.f32 %v629, %v631
    %v633 = vadd.f32 %v629, %v632
    %vm634 = vweird.f32 %v613
    %vm635 = vweird.f32 %v629
    %vm636 = vmor %vm634, %vm635
    %v637 = vsel %vm636, %v629, %v633
    %v638 = vand.u32 2147483647, %v613
    %vm639 = vcmp.eq.f32.partialorder %v638, 8.507059e+37
    %v640 = vand.u32 %v613, 2147483648
    %v641 = vor.u32 1.1754944e-38, %v640
    %v642 = vsel %vm639, %v641, %v637
    %v643 = vmul.f32 1.0, %v642
    %v644 = vrcp.pop %v614
    %v645 = vmul.f32 %v614, %v644
    %v646 = vsub.f32 1.0, %v645
    %v647 = vmul.f32 %v644, %v646
    %v648 = vadd.f32 %v644, %v647
    %vm649 = vweird.f32 %v614
    %vm650 = vweird.f32 %v644
    %vm651 = vmor %vm649, %vm650
    %v652 = vsel %vm651, %v644, %v648
    %v653 = vand.u32 2147483647, %v614
    %vm654 = vcmp.eq.f32.partialorder %v653, 8.507059e+37
    %v655 = vand.u32 %v614, 2147483648
    %v656 = vor.u32 1.1754944e-38, %v655
    %v657 = vsel %vm654, %v656, %v652
    %v658 = vmul.f32 1.0, %v657
    %v659 = vrcp.pop %v615
    %v660 = vmul.f32 %v615, %v659
    %v661 = vsub.f32 1.0, %v660
    %v662 = vmul.f32 %v659, %v661
    %v663 = vadd.f32 %v659, %v662
    %vm664 = vweird.f32 %v615
    %vm665 = vweird.f32 %v659
    %vm666 = vmor %vm664, %vm665
    %v667 = vsel %vm666, %v659, %v663
    %v668 = vand.u32 2147483647, %v615
    %vm669 = vcmp.eq.f32.partialorder %v668, 8.507059e+37
    %v670 = vand.u32 %v615, 2147483648
    %v671 = vor.u32 1.1754944e-38, %v670
    %v672 = vsel %vm669, %v671, %v667
    %v673 = vmul.f32 1.0, %v672
    %v674 = vrcp.pop %v616
    %v675 = vmul.f32 %v616, %v674
    %v676 = vsub.f32 1.0, %v675
    %v677 = vmul.f32 %v674, %v676
    %v678 = vadd.f32 %v674, %v677
    %vm679 = vweird.f32 %v616
    %vm680 = vweird.f32 %v674
    %vm681 = vmor %vm679, %vm680
    %v682 = vsel %vm681, %v674, %v678
    %v683 = vand.u32 2147483647, %v616
    %vm684 = vcmp.eq.f32.partialorder %v683, 8.507059e+37
    %v685 = vand.u32 %v616, 2147483648
    %v686 = vor.u32 1.1754944e-38, %v685
    %v687 = vsel %vm684, %v686, %v682
    %v688 = vmul.f32 1.0, %v687
    %v689 = vrcp.pop %v617
    %v690 = vmul.f32 %v617, %v689
    %v691 = vsub.f32 1.0, %v690
    %v692 = vmul.f32 %v689, %v691
    %v693 = vadd.f32 %v689, %v692
    %vm694 = vweird.f32 %v617
    %vm695 = vweird.f32 %v689
    %vm696 = vmor %vm694, %vm695
    %v697 = vsel %vm696, %v689, %v693
    %v698 = vand.u32 2147483647, %v617
    %vm699 = vcmp.eq.f32.partialorder %v698, 8.507059e+37
    %v700 = vand.u32 %v617, 2147483648
    %v701 = vor.u32 1.1754944e-38, %v700
    %v702 = vsel %vm699, %v701, %v697
    %v703 = vmul.f32 1.0, %v702
    %v704 = vrcp.pop %v618
    %v705 = vmul.f32 %v618, %v704
    %v706 = vsub.f32 1.0, %v705
    %v707 = vmul.f32 %v704, %v706
    %v708 = vadd.f32 %v704, %v707
    %vm709 = vweird.f32 %v618
    %vm710 = vweird.f32 %v704
    %vm711 = vmor %vm709, %vm710
    %v712 = vsel %vm711, %v704, %v708
    %v713 = vand.u32 2147483647, %v618
    %vm714 = vcmp.eq.f32.partialorder %v713, 8.507059e+37
    %v715 = vand.u32 %v618, 2147483648
    %v716 = vor.u32 1.1754944e-38, %v715
    %v717 = vsel %vm714, %v716, %v712
    %v718 = vmul.f32 1.0, %v717
    %v719 = vrcp.pop %v619
    %v720 = vmul.f32 %v619, %v719
    %v721 = vsub.f32 1.0, %v720
    %v722 = vmul.f32 %v719, %v721
    %v723 = vadd.f32 %v719, %v722
    %vm724 = vweird.f32 %v619
    %vm725 = vweird.f32 %v719
    %vm726 = vmor %vm724, %vm725
    %v727 = vsel %vm726, %v719, %v723
    %v728 = vand.u32 2147483647, %v619
    %vm729 = vcmp.eq.f32.partialorder %v728, 8.507059e+37
    %v730 = vand.u32 %v619, 2147483648
    %v731 = vor.u32 1.1754944e-38, %v730
    %v732 = vsel %vm729, %v731, %v727
    %v733 = vmul.f32 1.0, %v732
    %v734 = vrcp.pop %v620
    %v735 = vmul.f32 %v620, %v734
    %v736 = vsub.f32 1.0, %v735
    %v737 = vmul.f32 %v734, %v736
    %v738 = vadd.f32 %v734, %v737
    %vm739 = vweird.f32 %v620
    %vm740 = vweird.f32 %v734
    %vm741 = vmor %vm739, %vm740
    %v742 = vsel %vm741, %v734, %v738
    %v743 = vand.u32 2147483647, %v620
    %vm744 = vcmp.eq.f32.partialorder %v743, 8.507059e+37
    %v745 = vand.u32 %v620, 2147483648
    %v746 = vor.u32 1.1754944e-38, %v745
    %v747 = vsel %vm744, %v746, %v742
    %v748 = vmul.f32 1.0, %v747
    %v749 = vrcp.pop %v621
    %v750 = vmul.f32 %v621, %v749
    %v751 = vsub.f32 1.0, %v750
    %v752 = vmul.f32 %v749, %v751
    %v753 = vadd.f32 %v749, %v752
    %vm754 = vweird.f32 %v621
    %vm755 = vweird.f32 %v749
    %vm756 = vmor %vm754, %vm755
    %v757 = vsel %vm756, %v749, %v753
    %v758 = vand.u32 2147483647, %v621
    %vm759 = vcmp.eq.f32.partialorder %v758, 8.507059e+37
    %v760 = vand.u32 %v621, 2147483648
    %v761 = vor.u32 1.1754944e-38, %v760
    %v762 = vsel %vm759, %v761, %v757
    %v763 = vmul.f32 1.0, %v762
    %v764 = vrcp.pop %v622
    %v765 = vmul.f32 %v622, %v764
    %v766 = vsub.f32 1.0, %v765
    %v767 = vmul.f32 %v764, %v766
    %v768 = vadd.f32 %v764, %v767
    %vm769 = vweird.f32 %v622
    %vm770 = vweird.f32 %v764
    %vm771 = vmor %vm769, %vm770
    %v772 = vsel %vm771, %v764, %v768
    %v773 = vand.u32 2147483647, %v622
    %vm774 = vcmp.eq.f32.partialorder %v773, 8.507059e+37
    %v775 = vand.u32 %v622, 2147483648
    %v776 = vor.u32 1.1754944e-38, %v775
    %v777 = vsel %vm774, %v776, %v772
    %v778 = vmul.f32 1.0, %v777
    %v779 = vrcp.pop %v623
    %v780 = vmul.f32 %v623, %v779
    %v781 = vsub.f32 1.0, %v780
    %v782 = vmul.f32 %v779, %v781
    %v783 = vadd.f32 %v779, %v782
    %vm784 = vweird.f32 %v623
    %vm785 = vweird.f32 %v779
    %vm786 = vmor %vm784, %vm785
    %v787 = vsel %vm786, %v779, %v783
    %v788 = vand.u32 2147483647, %v623
    %vm789 = vcmp.eq.f32.partialorder %v788, 8.507059e+37
    %v790 = vand.u32 %v623, 2147483648
    %v791 = vor.u32 1.1754944e-38, %v790
    %v792 = vsel %vm789, %v791, %v787
    %v793 = vmul.f32 1.0, %v792
    %v794 = vrcp.pop %v624
    %v795 = vmul.f32 %v624, %v794
    %v796 = vsub.f32 1.0, %v795
    %v797 = vmul.f32 %v794, %v796
    %v798 = vadd.f32 %v794, %v797
    %vm799 = vweird.f32 %v624
    %vm800 = vweird.f32 %v794
    %vm801 = vmor %vm799, %vm800
    %v802 = vsel %vm801, %v794, %v798
    %v803 = vand.u32 2147483647, %v624
    %vm804 = vcmp.eq.f32.partialorder %v803, 8.507059e+37
    %v805 = vand.u32 %v624, 2147483648
    %v806 = vor.u32 1.1754944e-38, %v805
    %v807 = vsel %vm804, %v806, %v802
    %v808 = vmul.f32 1.0, %v807
    %v809 = vrcp.pop %v625
    %v810 = vmul.f32 %v625, %v809
    %v811 = vsub.f32 1.0, %v810
    %v812 = vmul.f32 %v809, %v811
    %v813 = vadd.f32 %v809, %v812
    %vm814 = vweird.f32 %v625
    %vm815 = vweird.f32 %v809
    %vm816 = vmor %vm814, %vm815
    %v817 = vsel %vm816, %v809, %v813
    %v818 = vand.u32 2147483647, %v625
    %vm819 = vcmp.eq.f32.partialorder %v818, 8.507059e+37
    %v820 = vand.u32 %v625, 2147483648
    %v821 = vor.u32 1.1754944e-38, %v820
    %v822 = vsel %vm819, %v821, %v817
    %v823 = vmul.f32 1.0, %v822
    %v824 = vrcp.pop %v626
    %v825 = vmul.f32 %v626, %v824
    %v826 = vsub.f32 1.0, %v825
    %v827 = vmul.f32 %v824, %v826
    %v828 = vadd.f32 %v824, %v827
    %vm829 = vweird.f32 %v626
    %vm830 = vweird.f32 %v824
    %vm831 = vmor %vm829, %vm830
    %v832 = vsel %vm831, %v824, %v828
    %v833 = vand.u32 2147483647, %v626
    %vm834 = vcmp.eq.f32.partialorder %v833, 8.507059e+37
    %v835 = vand.u32 %v626, 2147483648
    %v836 = vor.u32 1.1754944e-38, %v835
    %v837 = vsel %vm834, %v836, %v832
    %v838 = vmul.f32 1.0, %v837
    %v839 = vrcp.pop %v627
    %v840 = vmul.f32 %v627, %v839
    %v841 = vsub.f32 1.0, %v840
    %v842 = vmul.f32 %v839, %v841
    %v843 = vadd.f32 %v839, %v842
    %vm844 = vweird.f32 %v627
    %vm845 = vweird.f32 %v839
    %vm846 = vmor %vm844, %vm845
    %v847 = vsel %vm846, %v839, %v843
    %v848 = vand.u32 2147483647, %v627
    %vm849 = vcmp.eq.f32.partialorder %v848, 8.507059e+37
    %v850 = vand.u32 %v627, 2147483648
    %v851 = vor.u32 1.1754944e-38, %v850
    %v852 = vsel %vm849, %v851, %v847
    %v853 = vmul.f32 1.0, %v852
    %v854 = vrcp.pop %v628
    %v855 = vmul.f32 %v628, %v854
    %v856 = vsub.f32 1.0, %v855
    %v857 = vmul.f32 %v854, %v856
    %v858 = vadd.f32 %v854, %v857
    %vm859 = vweird.f32 %v628
    %vm860 = vweird.f32 %v854
    %vm861 = vmor %vm859, %vm860
    %v862 = vsel %vm861, %v854, %v858
    %v863 = vand.u32 2147483647, %v628
    %vm864 = vcmp.eq.f32.partialorder %v863, 8.507059e+37
    %v865 = vand.u32 %v628, 2147483648
    %v866 = vor.u32 1.1754944e-38, %v865
    %v867 = vsel %vm864, %v866, %v862
    %v868 = vmul.f32 1.0, %v867
    %v869 = vmul.f32 %v549, %v643
    %v870 = vmul.f32 %v550, %v658
    %v871 = vmul.f32 %v551, %v673
    %v872 = vmul.f32 %v552, %v688
    %v873 = vmul.f32 %v553, %v703
    %v874 = vmul.f32 %v554, %v718
    %v875 = vmul.f32 %v555, %v733
    %v876 = vmul.f32 %v556, %v748
    %v877 = vmul.f32 %v557, %v763
    %v878 = vmul.f32 %v558, %v778
    %v879 = vmul.f32 %v559, %v793
    %v880 = vmul.f32 %v560, %v808
    %v881 = vmul.f32 %v561, %v823
    %v882 = vmul.f32 %v562, %v838
    %v883 = vmul.f32 %v563, %v853
    %v884 = vmul.f32 %v564, %v868
    %885 = vst [vmem:[#allocation2] sm:$0xff] %v869
    %886 = vst [vmem:[#allocation2 + $0x8] sm:$0xff] %v870
    %887 = vst [vmem:[#allocation2 + $0x10] sm:$0xff] %v871
    %888 = vst [vmem:[#allocation2 + $0x18] sm:$0xff] %v872
    %889 = vst [vmem:[#allocation2 + $0x20] sm:$0xff] %v873
    %890 = vst [vmem:[#allocation2 + $0x28] sm:$0xff] %v874
    %891 = vst [vmem:[#allocation2 + $0x30] sm:$0xff] %v875
    %892 = vst [vmem:[#allocation2 + $0x38] sm:$0xff] %v876
    %893 = vst [vmem:[#allocation2 + $0x40] sm:$0xff] %v877
    %894 = vst [vmem:[#allocation2 + $0x48] sm:$0xff] %v878
    %895 = vst [vmem:[#allocation2 + $0x50] sm:$0xff] %v879
    %896 = vst [vmem:[#allocation2 + $0x58] sm:$0xff] %v880
    %897 = vst [vmem:[#allocation2 + $0x60] sm:$0xff] %v881
    %898 = vst [vmem:[#allocation2 + $0x68] sm:$0xff] %v882
    %899 = vst [vmem:[#allocation2 + $0x70] sm:$0xff] %v883
    %900 = vst [vmem:[#allocation2 + $0x78] sm:$0xff] %v884
    // Predicated region
    $region18: #{tpu_custom_call.1} parent=1 // pred_check
      _
    $region19: #{tpu_custom_call.1} parent=1 // pred_check_branch
      %902 = sbr.rel (0) target = $region21
    $region20: #{tpu_custom_call.1} parent=1 // pred_region
      %904 = vsyncadd [#allocation3], 0
      %s905 = sshll.u32 [#allocation2], 4
      %s906 = int_to_ptr.vmem [resolvable:$true] %s905
      %s907 = sshll.u32 %s4, 4
      %s908 = int_to_ptr.hbm [resolvable:$true] %s907
      %913 = dma.vmem_to_hbm [thread:$0]  %s906, 2048, %s908, [#allocation3], 128, 128, 8
    $region21: #{tpu_custom_call.1} parent=1 // pred_fallthru
      _
    // Predicated region
    $region22: #{tpu_custom_call.1} parent=1 // pred_check
      _
    $region23: #{tpu_custom_call.1} parent=1 // pred_check_branch
      %915 = sbr.rel (0) target = $region25
    $region24: #{tpu_custom_call.1} parent=1 // pred_region
      %917 = dma.done [#allocation3], 2048
    $region25: #{tpu_custom_call.1} parent=1 // pred_fallthru
      _
    %918 = vsyncpa [#allocation3], 1

</llo_original>
